<compile_context>
chip_gen: v7x
topology: tpu7x:2x2x1
jax: 0.10.0
libtpu: 0.0.40
codegen_flags: <defaults>
</compile_context>

<pallas_src>
import math

import jax
import jax.numpy as jnp
from jax.experimental import pallas as pl
from jax.experimental.pallas import tpu as pltpu


def _round_up(x, m):
    return ((x + m - 1) // m) * m


def _round_down(x, m):
    return (x // m) * m


def _vmem_capacity_bytes():
    """Best-effort VMEM capacity query; conservative fallback = 64 MiB (v7x per-TC)."""
    try:
        info = pltpu.get_tpu_info()
        cap = int(getattr(info, "vmem_capacity_bytes", 0) or 0)
        if cap > 0:
            return cap
    except Exception:
        pass
    return 64 * 1024 * 1024


def _make_kernel(in_features, half, mxu_min_k, matmul_dtype):
    def kernel(x_ref, wt_ref, o_ref):
        # x_ref: (TB, IN)   wt_ref: (IN, HALF)  (already scaled by 2*pi, f32)
        # o_ref: (TB, 2*HALF) -> [:, :HALF]=cos(f), [:, HALF:]=sin(f)
        if in_features >= mxu_min_k:
            # MXU path; optional bf16 cast keeps v6e/v7x MXU single-pass.
            x = x_ref[...]
            wt = wt_ref[...]
            if matmul_dtype is not None:
                x = x.astype(matmul_dtype)
                wt = wt.astype(matmul_dtype)
            f = jnp.dot(x, wt, preferred_element_type=jnp.float32)
        else:
            # Tiny K (e.g. 4): unrolled VPU broadcast-FMA, skip the MXU.
            x = x_ref[...].astype(jnp.float32)
            wt = wt_ref[...].astype(jnp.float32)
            f = x[:, 0:1] * wt[0:1, :]
            for k in range(1, in_features):
                f = f + x[:, k:k + 1] * wt[k:k + 1, :]
        # Two direct slice stores; cos/sin hit the single EUP slot (the
        # saturating unit).  No lane-axis concatenate, no (TB, 2*half) temp.
        o_ref[:, :half] = jnp.cos(f).astype(o_ref.dtype)
        o_ref[:, half:] = jnp.sin(f).astype(o_ref.dtype)

    return kernel


def fourier_features(x, weight, *, out_dtype=None, matmul_dtype=None, mxu_min_k=16):
    """x: [B, in_features]; weight: [out_features//2, in_features] (PyTorch layout)."""
    B, in_features = x.shape
    half, in_f2 = weight.shape
    assert in_features == in_f2
    out_features = 2 * half
    out_dtype = jnp.dtype(out_dtype if out_dtype is not None else x.dtype)

    # ---- parameter prep (one-time / init-time, plain XLA, not per-tile) ----
    wt = (2.0 * math.pi) * weight.T.astype(jnp.float32)          # (IN, HALF)

    # ---- generation-aware VMEM budget:
    # ~38 MiB scoped on v7x (64 MiB physical), ~70 MiB on v5e/v6e (128 MiB). ----
    vmem_cap = _vmem_capacity_bytes()
    vmem_limit = int(min(max(vmem_cap * 11 // 20, 24 * 1024 * 1024),
                         100 * 1024 * 1024))

    x_item = jnp.dtype(x.dtype).itemsize
    o_item = out_dtype.itemsize
    w_bytes = in_features * half * 4                  # single-buffered weight
    headroom = 2 * 1024 * 1024
    budget = max(vmem_limit - w_bytes - headroom, 4 * 1024 * 1024)
    # Per batch-row: 2x-buffered x row + 2x-buffered out row + f32 f/cos/sin temps.
    per_row = (2 * in_features * x_item
               + 2 * out_features * o_item
               + 3 * half * 4)

    B_pad8 = _round_up(B, 8)
    tb = min(4096, B_pad8, max(8, _round_down(budget // max(per_row, 1), 8)))
    tb = max(8, tb)
    # If the whole batch fits one tile, split into two "parallel" tiles so both
    # of v7x's TensorCores get work (one extra ~0.35us step on v5e/v6e).
    if tb >= B_pad8 and B_pad8 >= 16:
        tb = max(8, _round_up(B_pad8 // 2, 8))
    B_pad = _round_up(B, tb)

    x_pad = x if B_pad == B else jnp.pad(x, ((0, B_pad - B), (0, 0)))
    num_tiles = B_pad // tb

    cost = pl.CostEstimate(
        flops=2 * B_pad * half * in_features,
        transcendentals=2 * B_pad * half,
        bytes_accessed=(x_item * B_pad * in_features
                        + 4 * in_features * half
                        + o_item * B_pad * out_features),
    )

    # Weight block index is constant across the grid -> single-buffer it.
    try:
        w_spec = pl.BlockSpec((in_features, half), lambda i: (0, 0),
                              pipeline_mode=pl.Buffered(1))
    except TypeError:
        w_spec = pl.BlockSpec((in_features, half), lambda i: (0, 0))

    kernel = _make_kernel(in_features, half, mxu_min_k, matmul_dtype)

    out_pad = pl.pallas_call(
        kernel,
        out_shape=jax.ShapeDtypeStruct((B_pad, out_features), out_dtype),
        grid_spec=pltpu.PrefetchScalarGridSpec(
            num_scalar_prefetch=0,
            grid=(num_tiles,),
            in_specs=[
                pl.BlockSpec((tb, in_features), lambda i: (i, 0)),
                w_spec,
            ],
            out_specs=pl.BlockSpec((tb, out_features), lambda i: (i, 0)),
        ),
        compiler_params=pltpu.CompilerParams(
            dimension_semantics=("parallel",),
            vmem_limit_bytes=vmem_limit,
        ),
        cost_estimate=cost,
    )(x_pad, wt)

    return out_pad if B_pad == B else out_pad[:B]


if __name__ == "__main__":
    key = jax.random.PRNGKey(0)
    kx, kw = jax.random.split(key)

    batch = 8
    in_features = 4
    out_features = 32   # must be even
    std = 1.0

    # Deterministic parameter init (mirrors torch.randn(...) * std in __init__).
    weight = jax.random.normal(kw, (out_features // 2, in_features), jnp.float32) * std
    x = jax.random.normal(kx, (batch, in_features), jnp.float32)

    out = jax.block_until_ready(fourier_features(x, weight))

    # Reference check in plain JAX.
    f = 2.0 * math.pi * (x @ weight.T)
    ref = jnp.concatenate([jnp.cos(f), jnp.sin(f)], axis=-1)
    assert out.shape == (batch, out_features)
    assert jnp.allclose(out, ref, atol=1e-5, rtol=1e-5)

    print("KERNEL_OK")
</pallas_src>

<mosaic_0001>
module attributes {stable_mosaic.version = 11 : i64} {
  func.func @kernel(%arg0: i32, %arg1: memref<8x4xf32, #tpu.memory_space<vmem>>, %arg2: memref<4x16xf32, #tpu.memory_space<vmem>>, %arg3: memref<8x32xf32, #tpu.memory_space<vmem>>) attributes {dimension_semantics = [#tpu.dimension_semantics<parallel>], iteration_bounds = array<i64: 1>, scalar_prefetch = 0 : i64, scratch_operands = 0 : i64, tpu.core_type = #tpu.core_type<tc>, window_params = [{transform_indices = @transform_0, window_bounds = array<i64: 8, 4>}, {pipeline_mode = #tpu.pipeline_mode<synchronous>, transform_indices = @transform_1, window_bounds = array<i64: 4, 16>}, {transform_indices = @transform_2, window_bounds = array<i64: 8, 32>}]} {
    %c0 = arith.constant 0 : index
    %c0_0 = arith.constant 0 : index
    %0 = vector.load %arg1[%c0, %c0_0] : memref<8x4xf32, #tpu.memory_space<vmem>>, vector<8x4xf32>
    %c0_1 = arith.constant 0 : index
    %c0_2 = arith.constant 0 : index
    %1 = vector.load %arg2[%c0_1, %c0_2] : memref<4x16xf32, #tpu.memory_space<vmem>>, vector<4x16xf32>
    %2 = vector.extract_strided_slice %0 {offsets = [0, 0], sizes = [8, 1], strides = [1, 1]} : vector<8x4xf32> to vector<8x1xf32>
    %3 = vector.extract_strided_slice %1 {offsets = [0, 0], sizes = [1, 16], strides = [1, 1]} : vector<4x16xf32> to vector<1x16xf32>
    %4 = vector.broadcast %2 : vector<8x1xf32> to vector<8x16xf32>
    %5 = vector.broadcast %3 : vector<1x16xf32> to vector<8x16xf32>
    %6 = arith.mulf %4, %5 : vector<8x16xf32>
    %7 = vector.extract_strided_slice %0 {offsets = [0, 1], sizes = [8, 1], strides = [1, 1]} : vector<8x4xf32> to vector<8x1xf32>
    %8 = vector.extract_strided_slice %1 {offsets = [1, 0], sizes = [1, 16], strides = [1, 1]} : vector<4x16xf32> to vector<1x16xf32>
    %9 = vector.broadcast %7 : vector<8x1xf32> to vector<8x16xf32>
    %10 = vector.broadcast %8 : vector<1x16xf32> to vector<8x16xf32>
    %11 = arith.mulf %9, %10 : vector<8x16xf32>
    %12 = arith.addf %6, %11 : vector<8x16xf32>
    %13 = vector.extract_strided_slice %0 {offsets = [0, 2], sizes = [8, 1], strides = [1, 1]} : vector<8x4xf32> to vector<8x1xf32>
    %14 = vector.extract_strided_slice %1 {offsets = [2, 0], sizes = [1, 16], strides = [1, 1]} : vector<4x16xf32> to vector<1x16xf32>
    %15 = vector.broadcast %13 : vector<8x1xf32> to vector<8x16xf32>
    %16 = vector.broadcast %14 : vector<1x16xf32> to vector<8x16xf32>
    %17 = arith.mulf %15, %16 : vector<8x16xf32>
    %18 = arith.addf %12, %17 : vector<8x16xf32>
    %19 = vector.extract_strided_slice %0 {offsets = [0, 3], sizes = [8, 1], strides = [1, 1]} : vector<8x4xf32> to vector<8x1xf32>
    %20 = vector.extract_strided_slice %1 {offsets = [3, 0], sizes = [1, 16], strides = [1, 1]} : vector<4x16xf32> to vector<1x16xf32>
    %21 = vector.broadcast %19 : vector<8x1xf32> to vector<8x16xf32>
    %22 = vector.broadcast %20 : vector<1x16xf32> to vector<8x16xf32>
    %23 = arith.mulf %21, %22 : vector<8x16xf32>
    %24 = arith.addf %18, %23 : vector<8x16xf32>
    %25 = math.cos %24 : vector<8x16xf32>
    %c0_3 = arith.constant 0 : index
    %c0_4 = arith.constant 0 : index
    %26 = vector.load %arg3[%c0_3, %c0_4] : memref<8x32xf32, #tpu.memory_space<vmem>>, vector<8x16xf32>
    tpu.vector_store %arg3[%c0_3, %c0_4], %25 {strides = array<i32>} : memref<8x32xf32, #tpu.memory_space<vmem>>, vector<8x16xf32>,
    %27 = math.sin %24 : vector<8x16xf32>
    %c0_5 = arith.constant 0 : index
    %c16 = arith.constant 16 : index
    %28 = vector.load %arg3[%c0_5, %c16] : memref<8x32xf32, #tpu.memory_space<vmem>>, vector<8x16xf32>
    tpu.vector_store %arg3[%c0_5, %c16], %27 {strides = array<i32>} : memref<8x32xf32, #tpu.memory_space<vmem>>, vector<8x16xf32>,
    return
  }
  func.func @transform_0(%arg0: i32) -> (i32, i32) {
    %c0_i32 = arith.constant 0 : i32
    %c0_i32_0 = arith.constant 0 : i32
    return %arg0, %c0_i32 : i32, i32
  }
  func.func @transform_1(%arg0: i32) -> (i32, i32) {
    %c0_i32 = arith.constant 0 : i32
    %c0_i32_0 = arith.constant 0 : i32
    %c0_i32_1 = arith.constant 0 : i32
    return %c0_i32, %c0_i32_0 : i32, i32
  }
  func.func @transform_2(%arg0: i32) -> (i32, i32) {
    %c0_i32 = arith.constant 0 : i32
    %c0_i32_0 = arith.constant 0 : i32
    return %arg0, %c0_i32 : i32, i32
  }
}

</mosaic_0001>

<llo_original>
// kernel: tpu_custom_call.1
$region0: #{tpu_custom_call.1}
  #allocation0 [shape = 'u32[]', space=smem, size = 0x4, offset = 0x4, fixed_abs, tag = 'smem constant byte address 0x4 - core index']
  #allocation1 [shape = 'u32[144,128]{1,0:T(1,128)}', space=vmem, size = 0x12000, scoped, tag = 'internal scratch']
  %s0 = inlined_call_operand.vmem [shape: f32[8,4], index: 0, kind: input, shape index: {}]
  %s1 = inlined_call_operand.vmem [shape: f32[4,16], index: 1, kind: input, shape index: {}]
  %s2 = inlined_call_operand.hbm [shape: f32[8,32], index: 2, kind: output, shape index: {}]
  %s3 = sld [smem:[#allocation0]]
  $region18: #{tpu_custom_call.1} parent=0
    _
  %s5 = ssub.s32 1, %s3
  %s6 = scalar_select 0, %s5, %s3
  $region1: #{tpu_custom_call.1} parent=0
    #allocation2 [shape = 'u8[4096]{0}', space=vmem, size = 0x1000, scoped, tag = 'output window, operand 0, single buffered']
    #allocation3 [shape = 's32[1]{0}', space=sflag, size = 0x4, scoped, tag = 'scoped memory for tpu_custom_call.1']
    %7 = vsyncpa [#allocation3], 0
    // Predicated region
    $region2: #{tpu_custom_call.1} parent=1 // pred_check
      _
    $region3: #{tpu_custom_call.1} parent=1 // pred_check_branch
      %9 = sbr.rel (0) target = $region5
    $region4: #{tpu_custom_call.1} parent=1 // pred_region
      _
    $region5: #{tpu_custom_call.1} parent=1 // pred_fallthru
      _
    // Predicated region
    $region6: #{tpu_custom_call.1} parent=1 // pred_check
      _
    $region7: #{tpu_custom_call.1} parent=1 // pred_check_branch
      %11 = sbr.rel (0) target = $region9
    $region8: #{tpu_custom_call.1} parent=1 // pred_region
      _
    $region9: #{tpu_custom_call.1} parent=1 // pred_fallthru
      _
    %v12 = vld [vmem:[%s0] sm:$0xff]
    %v13 = vld [vmem:[%s1] sm:$0xf]
    %15 = vset.pattern.permute.xlu0 0
    %16 = vperm.xlu0 %15, %v12
    %v17 = vpop.permute.xlu0 %16
    %v19 = vlaneseq
    %v20 = vshrl.u32 %v19, 7
    %v21 = vsub.s32 0, %v20
    %v22 = vrot.slane %v13, %v21
    %v23 = vmul.f32 %v17, %v22
    %24 = vset.pattern.permute.xlu0 1
    %25 = vperm.xlu0 %24, %v12
    %v26 = vpop.permute.xlu0 %25
    %v28 = vlaneseq
    %v29 = vshrl.u32 %v28, 7
    %v30 = vsub.s32 1, %v29
    %v31 = vrot.slane %v13, %v30
    %v32 = vmul.f32 %v26, %v31
    %v33 = vadd.f32 %v23, %v32
    %34 = vset.pattern.permute.xlu0 2
    %35 = vperm.xlu0 %34, %v12
    %v36 = vpop.permute.xlu0 %35
    %v38 = vlaneseq
    %v39 = vshrl.u32 %v38, 7
    %v40 = vsub.s32 2, %v39
    %v41 = vrot.slane %v13, %v40
    %v42 = vmul.f32 %v36, %v41
    %v43 = vadd.f32 %v33, %v42
    %44 = vset.pattern.permute.xlu0 3
    %45 = vperm.xlu0 %44, %v12
    %v46 = vpop.permute.xlu0 %45
    %v48 = vlaneseq
    %v49 = vshrl.u32 %v48, 7
    %v50 = vsub.s32 3, %v49
    %v51 = vrot.slane %v13, %v50
    %v52 = vmul.f32 %v46, %v51
    %v53 = vadd.f32 %v43, %v52
    %v54 = vand.u32 2147483647, %v53
    %vm55 = vcmp.le.f32.partialorder %v54, 0.7853982
    %vm56 = vcmp.lt.s32.totalorder %v53, 0
    %v57 = vand.u32 %v53, 2139095040
    %v58 = vshrl.u32 %v57, 23
    %v59 = vsub.s32 %v58, 127
    %v60 = vand.u32 2147483647, %v53
    %v61 = vand.u32 %v60, 8388607
    %v62 = vor.u32 %v61, 8388608
    %v63 = vsub.s32 0, %v62
    %v64 = vadd.s32 %v59, 1
    %vm65 = vcmp.gt.s32.totalorder %v64, 0
    %v66 = vsel %vm65, %v64, 0
    %v67 = vshrl.u32 %v66, 5
    %v68 = vand.u32 %v66, 31
    %v69 = vsub.s32 32, %v68
    %v70 = vshrl.u32 683565275, %v69
    %v71 = vshll.u32 683565275, %v68
    %v72 = vshrl.u32 2475754826, %v69
    %v73 = vor.u32 %v71, %v72
    %v74 = vshll.u32 2475754826, %v68
    %v75 = vshrl.u32 2131351028, %v69
    %v76 = vor.u32 %v74, %v75
    %v77 = vshll.u32 2131351028, %v68
    %v78 = vshrl.u32 2102212464, %v69
    %v79 = vor.u32 %v77, %v78
    %v80 = vshll.u32 2102212464, %v68
    %v81 = vshrl.u32 920167782, %v69
    %v82 = vor.u32 %v80, %v81
    %v83 = vshll.u32 920167782, %v68
    %v84 = vshrl.u32 1326507024, %v69
    %v85 = vor.u32 %v83, %v84
    %vm86 = vcmp.lt.s32.totalorder %v67, 1
    %vm87 = vcmp.lt.s32.totalorder %v67, 2
    %vm88 = vcmp.lt.s32.totalorder %v67, 3
    %vm89 = vcmp.lt.s32.totalorder %v67, 4
    %v90 = vsel %vm86, %v70, %v73
    %v91 = vsel %vm89, %v79, 2102212464
    %v92 = vsel %vm88, %v76, %v91
    %v93 = vsel %vm87, %v90, %v92
    %v94 = vsel %vm86, %v73, %v76
    %v95 = vsel %vm89, %v82, 920167782
    %v96 = vsel %vm88, %v79, %v95
    %v97 = vsel %vm87, %v94, %v96
    %v98 = vsel %vm86, %v76, %v79
    %v99 = vsel %vm89, %v85, 1326507024
    %v100 = vsel %vm88, %v82, %v99
    %v101 = vsel %vm87, %v98, %v100
    %v102 = vshll.u32 %v62, 8
    %v103 = vmul.u32.u64.compose %v102, %v101
    %v104 = vextract.low.u32 %v103
    %v105 = vextract.high.u32 %v103
    %v106 = vmul.u32.u64.compose %v102, %v97
    %v107 = vextract.low.u32 %v106
    %v108 = vextract.high.u32 %v106
    %v109 = vmul.u32 %v102, %v93
    %v110 = vadd.s32 %v105, %v107
    %vm111 = vc.u32 %v105, %v107
    %v112 = vadd.s32 %v108, 1
    %v113 = vsel %vm111, %v112, %v108
    %v114 = vadd.s32 %v109, %v113
    %v115 = vadd.s32 %v114, 536870912
    %v116 = vshrl.u32 %v115, 30
    %v117 = vshll.u32 %v116, 30
    %v118 = vsub.s32 %v114, %v117
    %vm119 = vcmp.lt.s32.totalorder %v118, 0
    %v120 = vsub.s32 0, %v118
    %v121 = vsel %vm119, %v120, %v118
    %v122 = vclz %v121
    %v123 = vsub.s32 %v122, 2
    %vm124 = vcmp.gt.s32.totalorder 0, %v123
    %v125 = vsel %vm124, 0, %v123
    %v126 = vsub.s32 32, %v125
    %v127 = vshll.u32 %v118, %v125
    %v128 = vshrl.u32 %v110, %v126
    %v129 = vor.u32 %v127, %v128
    %v130 = vsub.s32 4294967266, %v125
    %v131 = vadd.s32 %v130, 127
    %v132 = vshll.u32 %v131, 23
    %v133 = vor.u32 4788187, %v132
    %v134 = vand.u32 2147483647, %v133
    %v136 = vcvt.s32.f32 %v129
    %v137 = vmul.f32 %v136, %v134
    %v138 = vxor.u32 %v137, 2147483648
    %v139 = vsel %vm56, %v138, %v137
    %v140 = vsub.s32 4, %v116
    %v141 = vsel %vm56, %v140, %v116
    %v142 = vsel %vm55, %v53, %v139
    %v143 = vsel %vm55, 0, %v141
    %v144 = vcosq.f32.pop %v142
    %v145 = vsinq.f32.pop %v142
    %vm146 = vweird.f32 %v53
    %v147 = vand.u32 %v143, 3
    %vm148 = vcmp.lt.s32.totalorder %v147, 2
    %vm149 = vcmp.eq.s32.totalorder %v147, 0
    %v150 = vxor.u32 %v145, 2147483648
    %v151 = vsel %vm149, %v144, %v150
    %vm152 = vcmp.eq.s32.totalorder %v147, 2
    %v153 = vxor.u32 %v144, 2147483648
    %v154 = vsel %vm152, %v153, %v145
    %v155 = vsel %vm148, %v151, %v154
    %v156 = vsel %vm146, nan, %v155
    %vm157 = vcmask 130048
    %158 = vst.msk [vmem:[#allocation2] sm:$0xff] %vm157, %v156
    %v159 = vand.u32 2147483647, %v53
    %vm160 = vcmp.le.f32.partialorder %v159, 0.7853982
    %vm161 = vcmp.lt.s32.totalorder %v53, 0
    %v162 = vand.u32 %v53, 2139095040
    %v163 = vshrl.u32 %v162, 23
    %v164 = vsub.s32 %v163, 127
    %v165 = vand.u32 2147483647, %v53
    %v166 = vand.u32 %v165, 8388607
    %v167 = vor.u32 %v166, 8388608
    %v168 = vsub.s32 0, %v167
    %v169 = vadd.s32 %v164, 1
    %vm170 = vcmp.gt.s32.totalorder %v169, 0
    %v171 = vsel %vm170, %v169, 0
    %v172 = vshrl.u32 %v171, 5
    %v173 = vand.u32 %v171, 31
    %v174 = vsub.s32 32, %v173
    %v175 = vshrl.u32 683565275, %v174
    %v176 = vshll.u32 683565275, %v173
    %v177 = vshrl.u32 2475754826, %v174
    %v178 = vor.u32 %v176, %v177
    %v179 = vshll.u32 2475754826, %v173
    %v180 = vshrl.u32 2131351028, %v174
    %v181 = vor.u32 %v179, %v180
    %v182 = vshll.u32 2131351028, %v173
    %v183 = vshrl.u32 2102212464, %v174
    %v184 = vor.u32 %v182, %v183
    %v185 = vshll.u32 2102212464, %v173
    %v186 = vshrl.u32 920167782, %v174
    %v187 = vor.u32 %v185, %v186
    %v188 = vshll.u32 920167782, %v173
    %v189 = vshrl.u32 1326507024, %v174
    %v190 = vor.u32 %v188, %v189
    %vm191 = vcmp.lt.s32.totalorder %v172, 1
    %vm192 = vcmp.lt.s32.totalorder %v172, 2
    %vm193 = vcmp.lt.s32.totalorder %v172, 3
    %vm194 = vcmp.lt.s32.totalorder %v172, 4
    %v195 = vsel %vm191, %v175, %v178
    %v196 = vsel %vm194, %v184, 2102212464
    %v197 = vsel %vm193, %v181, %v196
    %v198 = vsel %vm192, %v195, %v197
    %v199 = vsel %vm191, %v178, %v181
    %v200 = vsel %vm194, %v187, 920167782
    %v201 = vsel %vm193, %v184, %v200
    %v202 = vsel %vm192, %v199, %v201
    %v203 = vsel %vm191, %v181, %v184
    %v204 = vsel %vm194, %v190, 1326507024
    %v205 = vsel %vm193, %v187, %v204
    %v206 = vsel %vm192, %v203, %v205
    %v207 = vshll.u32 %v167, 8
    %v208 = vmul.u32.u64.compose %v207, %v206
    %v209 = vextract.low.u32 %v208
    %v210 = vextract.high.u32 %v208
    %v211 = vmul.u32.u64.compose %v207, %v202
    %v212 = vextract.low.u32 %v211
    %v213 = vextract.high.u32 %v211
    %v214 = vmul.u32 %v207, %v198
    %v215 = vadd.s32 %v210, %v212
    %vm216 = vc.u32 %v210, %v212
    %v217 = vadd.s32 %v213, 1
    %v218 = vsel %vm216, %v217, %v213
    %v219 = vadd.s32 %v214, %v218
    %v220 = vadd.s32 %v219, 536870912
    %v221 = vshrl.u32 %v220, 30
    %v222 = vshll.u32 %v221, 30
    %v223 = vsub.s32 %v219, %v222
    %vm224 = vcmp.lt.s32.totalorder %v223, 0
    %v225 = vsub.s32 0, %v223
    %v226 = vsel %vm224, %v225, %v223
    %v227 = vclz %v226
    %v228 = vsub.s32 %v227, 2
    %vm229 = vcmp.gt.s32.totalorder 0, %v228
    %v230 = vsel %vm229, 0, %v228
    %v231 = vsub.s32 32, %v230
    %v232 = vshll.u32 %v223, %v230
    %v233 = vshrl.u32 %v215, %v231
    %v234 = vor.u32 %v232, %v233
    %v235 = vsub.s32 4294967266, %v230
    %v236 = vadd.s32 %v235, 127
    %v237 = vshll.u32 %v236, 23
    %v238 = vor.u32 4788187, %v237
    %v239 = vand.u32 2147483647, %v238
    %v241 = vcvt.s32.f32 %v234
    %v242 = vmul.f32 %v241, %v239
    %v243 = vxor.u32 %v242, 2147483648
    %v244 = vsel %vm161, %v243, %v242
    %v245 = vsub.s32 4, %v221
    %v246 = vsel %vm161, %v245, %v221
    %v247 = vsel %vm160, %v53, %v244
    %v248 = vsel %vm160, 0, %v246
    %v249 = vcosq.f32.pop %v247
    %v250 = vsinq.f32.pop %v247
    %vm251 = vweird.f32 %v53
    %v252 = vadd.s32 %v248, 3
    %v253 = vand.u32 %v252, 3
    %vm254 = vcmp.lt.s32.totalorder %v253, 2
    %vm255 = vcmp.eq.s32.totalorder %v253, 0
    %v256 = vxor.u32 %v250, 2147483648
    %v257 = vsel %vm255, %v249, %v256
    %vm258 = vcmp.eq.s32.totalorder %v253, 2
    %v259 = vxor.u32 %v249, 2147483648
    %v260 = vsel %vm258, %v259, %v250
    %v261 = vsel %vm254, %v257, %v260
    %v262 = vsel %vm251, nan, %v261
    %264 = vrot.lane.b32.xlu0 %v262, 16
    %v265 = vpop.permute.xlu0 %264
    %vm267 = vcmask 261248
    %268 = vst.msk [vmem:[#allocation2] sm:$0xff] %vm267, %v265
    // Predicated region
    $region10: #{tpu_custom_call.1} parent=1 // pred_check
      _
    $region11: #{tpu_custom_call.1} parent=1 // pred_check_branch
      %270 = sbr.rel (0) target = $region13
    $region12: #{tpu_custom_call.1} parent=1 // pred_region
      %s272 = ssub.s32 128, 128
      %273 = vsyncadd [#allocation3], %s272
      %s275 = sshll.u32 [#allocation2], 4
      %s276 = int_to_ptr.vmem [resolvable:$true] %s275
      %278 = dma.vmem_to_hbm [thread:$0]  %s276, 128, %s2, [#allocation3]
    $region13: #{tpu_custom_call.1} parent=1 // pred_fallthru
      _
    // Predicated region
    $region14: #{tpu_custom_call.1} parent=1 // pred_check
      _
    $region15: #{tpu_custom_call.1} parent=1 // pred_check_branch
      %280 = sbr.rel (0) target = $region17
    $region16: #{tpu_custom_call.1} parent=1 // pred_region
      %281 = dma.done [#allocation3], 128
    $region17: #{tpu_custom_call.1} parent=1 // pred_fallthru
      _
    %282 = vsyncpa [#allocation3], 1

</llo_original>
